<compile_context>
chip_gen: v7x
topology: tpu7x:2x2x1
jax: 0.10.0
libtpu: 0.0.40
codegen_flags: <defaults>
</compile_context>

<pallas_src>
import jax
import jax.numpy as jnp
from jax import lax
from jax.experimental import pallas as pl
from jax.experimental.pallas import tpu as pltpu


def _make_kernel(lambda1: float, lambda2: float):
    """Builds the per-(TM,TN)-tile kernel with lambdas baked in as constants."""

    def kernel(u_ref, v_ref, m_ref, w1_ref, w2_ref, out_ref):
        j = pl.program_id(1)

        u_raw = u_ref[...]                                    # (TM, Dp)
        v_raw = v_ref[...]                                    # (TN, Dp)

        # U_i @ V_j^T on the MXU (contract last dims of both; no transpose).
        uv = lax.dot_general(u_raw, v_raw, (((1,), (1,)), ((), ())),
                             preferred_element_type=jnp.float32)   # (TM, TN)

        uf = u_raw.astype(jnp.float32)
        vf = v_raw.astype(jnp.float32)
        mf = m_ref[...].astype(jnp.float32)
        w1 = w1_ref[...].astype(jnp.float32)
        w2 = w2_ref[...].astype(jnp.float32)

        # ||u_i||^2 as a (TM, 1) column (lane reduction, natural layout).
        u_sq = jnp.sum(uf * uf, axis=1, keepdims=True)              # (TM, 1)
        # ||v_j||^2 directly in (1, TN) lane layout via a tiny ones-matvec,
        # avoiding both an in-kernel transpose and a skinny W matmul.
        ones_d = jnp.ones((1, uf.shape[1]), dtype=jnp.float32)
        v_sq_row = lax.dot_general(ones_d, vf * vf, (((1,), (1,)), ((), ())),
                                   preferred_element_type=jnp.float32)  # (1, TN)

        w = lambda2 * w1 + lambda1 * w2
        diff = uv - mf
        # Single fused elementwise pass + one reduction for the main term.
        e = diff * diff + w * (u_sq + v_sq_row - 2.0 * uv)
        s_main = jnp.sum(e)
        # W1 Frobenius term: accumulate sum(W1^2) separately (sqrt is global).
        s_w1sq = jnp.sum(w1 * w1)

        # Place the two partial scalars into lanes 0 / 1 of the resident
        # per-row-block output tile (vectorized scatter via iota masks).
        sub = lax.broadcasted_iota(jnp.int32, out_ref.shape, 1)
        lane = lax.broadcasted_iota(jnp.int32, out_ref.shape, 2)
        contrib = (jnp.where((sub == 0) & (lane == 0), s_main, 0.0)
                   + jnp.where((sub == 0) & (lane == 1), s_w1sq, 0.0))

        @pl.when(j == 0)
        def _():
            out_ref[...] = jnp.zeros_like(out_ref)

        out_ref[...] += contrib

    return kernel


def _round_up(x: int, m: int) -> int:
    return -(-x // m) * m


def mean_square_adaptive_loss(U, V, M, W1, W2, lambda1, lambda2):
    """Forward pass of MeanSquareWithAdaptiveConstraintAndSpatialEnhanced.

    lambda1 / lambda2 must be Python scalars (they are baked into the kernel).
    """
    N, D = U.shape
    assert V.shape == (N, D)
    assert M.shape == (N, N) and W1.shape == (N, N) and W2.shape == (N, N)

    # MXU/lane-friendly tiles: 256 for large/aligned N (v6e/v7x MXU), else 128.
    tile = 256 if (N % 256 == 0 or N >= 1024) else 128
    np_pad = _round_up(N, tile)
    dp_pad = max(128, _round_up(D, 128))

    def pad2(x, rows, cols):
        pr, pc = rows - x.shape[0], cols - x.shape[1]
        if pr or pc:
            x = jnp.pad(x, ((0, pr), (0, pc)))
        return x

    u_p = pad2(U, np_pad, dp_pad)
    v_p = pad2(V, np_pad, dp_pad)
    m_p = pad2(M, np_pad, np_pad)
    w1_p = pad2(W1, np_pad, np_pad)
    w2_p = pad2(W2, np_pad, np_pad)

    n_i = np_pad // tile
    n_j = np_pad // tile

    kernel = _make_kernel(float(lambda1), float(lambda2))

    cost = pl.CostEstimate(
        flops=2 * np_pad * np_pad * dp_pad + 8 * np_pad * np_pad,
        transcendentals=0,
        bytes_accessed=3 * np_pad * np_pad * m_p.dtype.itemsize
        + 2 * np_pad * dp_pad * u_p.dtype.itemsize,
    )

    partials = pl.pallas_call(
        kernel,
        out_shape=jax.ShapeDtypeStruct((n_i, 8, 128), jnp.float32),
        grid=(n_i, n_j),
        in_specs=[
            pl.BlockSpec((tile, dp_pad), lambda i, j: (i, 0)),   # U row-block
            pl.BlockSpec((tile, dp_pad), lambda i, j: (j, 0)),   # V col-block
            pl.BlockSpec((tile, tile), lambda i, j: (i, j)),     # M
            pl.BlockSpec((tile, tile), lambda i, j: (i, j)),     # W1
            pl.BlockSpec((tile, tile), lambda i, j: (i, j)),     # W2
        ],
        out_specs=pl.BlockSpec((1, 8, 128), lambda i, j: (i, 0, 0)),
        compiler_params=pltpu.CompilerParams(
            dimension_semantics=("parallel", "arbitrary")),
        cost_estimate=cost,
    )(u_p, v_p, m_p, w1_p, w2_p)

    main_total = jnp.sum(partials[:, 0, 0])
    w1sq_total = jnp.sum(partials[:, 0, 1])
    return (main_total + jnp.sqrt(w1sq_total)) / (N * N)


def _reference(U, V, M, W1, W2, lambda1, lambda2):
    """Plain-JAX replica of the PyTorch forward (element-by-element distances)."""
    U = U.astype(jnp.float32)
    V = V.astype(jnp.float32)
    total = jnp.sum(jnp.square(U @ V.T - M))
    d = jnp.sum(jnp.square(U[:, None, :] - V[None, :, :]), axis=-1)  # (N, N)
    total += jnp.sum(d * (lambda2 * W1 + lambda1 * W2))
    total += jnp.sqrt(jnp.sum(jnp.square(W1)))
    return total / (M.shape[0] * M.shape[1])


if __name__ == "__main__":
    key = jax.random.PRNGKey(0)
    lambda1, lambda2 = 0.1, 0.2

    # --- Case 1: tiny shapes implied by the module (single tile, padded) -----
    N, D = 8, 32
    kU, kV, kM, kW1, kW2, key = jax.random.split(key, 6)
    U = jax.random.normal(kU, (N, D), dtype=jnp.float32) * 0.1
    V = jax.random.normal(kV, (N, D), dtype=jnp.float32) * 0.1
    M = jax.random.normal(kM, (N, N), dtype=jnp.float32)
    W1 = jax.random.uniform(kW1, (N, N), dtype=jnp.float32)
    W2 = jax.random.uniform(kW2, (N, N), dtype=jnp.float32)

    loss = mean_square_adaptive_loss(U, V, M, W1, W2, lambda1, lambda2)
    jax.block_until_ready(loss)
    ref = _reference(U, V, M, W1, W2, lambda1, lambda2)
    assert jnp.allclose(loss, ref, rtol=1e-4, atol=1e-5), (loss, ref)

    # --- Case 2: multi-tile grid with ragged N/D (exercises padding + accum) -
    N2, D2 = 320, 48
    kU, kV, kM, kW1, kW2, key = jax.random.split(key, 6)
    U2 = jax.random.normal(kU, (N2, D2), dtype=jnp.float32) * 0.1
    V2 = jax.random.normal(kV, (N2, D2), dtype=jnp.float32) * 0.1
    M2 = jax.random.normal(kM, (N2, N2), dtype=jnp.float32)
    W1b = jax.random.uniform(kW1, (N2, N2), dtype=jnp.float32)
    W2b = jax.random.uniform(kW2, (N2, N2), dtype=jnp.float32)

    loss2 = mean_square_adaptive_loss(U2, V2, M2, W1b, W2b, lambda1, lambda2)
    jax.block_until_ready(loss2)
    ref2 = _reference(U2, V2, M2, W1b, W2b, lambda1, lambda2)
    assert jnp.allclose(loss2, ref2, rtol=1e-4, atol=1e-4), (loss2, ref2)

    print("KERNEL_OK")
</pallas_src>

<mosaic_0001>
module attributes {stable_mosaic.version = 11 : i64} {
  func.func @kernel(%arg0: i32, %arg1: i32, %arg2: memref<128x128xf32, #tpu.memory_space<vmem>>, %arg3: memref<128x128xf32, #tpu.memory_space<vmem>>, %arg4: memref<128x128xf32, #tpu.memory_space<vmem>>, %arg5: memref<128x128xf32, #tpu.memory_space<vmem>>, %arg6: memref<128x128xf32, #tpu.memory_space<vmem>>, %arg7: memref<1x8x128xf32, #tpu.memory_space<vmem>>) attributes {dimension_semantics = [#tpu.dimension_semantics<parallel>, #tpu.dimension_semantics<arbitrary>], iteration_bounds = array<i64: 1, 1>, scalar_prefetch = 0 : i64, scratch_operands = 0 : i64, tpu.core_type = #tpu.core_type<tc>, window_params = [{transform_indices = @transform_0, window_bounds = array<i64: 128, 128>}, {transform_indices = @transform_1, window_bounds = array<i64: 128, 128>}, {transform_indices = @transform_2, window_bounds = array<i64: 128, 128>}, {transform_indices = @transform_3, window_bounds = array<i64: 128, 128>}, {transform_indices = @transform_4, window_bounds = array<i64: 128, 128>}, {transform_indices = @transform_5, window_bounds = array<i64: 1, 8, 128>}]} {
    %c0 = arith.constant 0 : index
    %c0_0 = arith.constant 0 : index
    %0 = vector.load %arg2[%c0, %c0_0] : memref<128x128xf32, #tpu.memory_space<vmem>>, vector<128x128xf32>
    %c0_1 = arith.constant 0 : index
    %c0_2 = arith.constant 0 : index
    %1 = vector.load %arg3[%c0_1, %c0_2] : memref<128x128xf32, #tpu.memory_space<vmem>>, vector<128x128xf32>
    %cst = arith.constant dense<0.000000e+00> : vector<128x128xf32>
    %2 = tpu.matmul %0, %1, %cst {dimension_numbers = #tpu.dot_dimension_numbers<[1], [1], [0], [0], [0, 0, 1, 0], [], []>} : vector<128x128xf32>, vector<128x128xf32>, vector<128x128xf32> -> vector<128x128xf32>
    %c0_3 = arith.constant 0 : index
    %c0_4 = arith.constant 0 : index
    %3 = vector.load %arg4[%c0_3, %c0_4] : memref<128x128xf32, #tpu.memory_space<vmem>>, vector<128x128xf32>
    %c0_5 = arith.constant 0 : index
    %c0_6 = arith.constant 0 : index
    %4 = vector.load %arg5[%c0_5, %c0_6] : memref<128x128xf32, #tpu.memory_space<vmem>>, vector<128x128xf32>
    %c0_7 = arith.constant 0 : index
    %c0_8 = arith.constant 0 : index
    %5 = vector.load %arg6[%c0_7, %c0_8] : memref<128x128xf32, #tpu.memory_space<vmem>>, vector<128x128xf32>
    %6 = arith.mulf %0, %0 : vector<128x128xf32>
    %cst_9 = arith.constant dense<0.000000e+00> : vector<128xf32>
    %7 = vector.multi_reduction <add>, %6, %cst_9 [1] : vector<128x128xf32> to vector<128xf32>
    %8 = vector.shape_cast %7 : vector<128xf32> to vector<128x1xf32>
    %cst_10 = arith.constant 1.000000e+00 : f32
    %9 = vector.broadcast %cst_10 : f32 to vector<1x128xf32>
    %10 = arith.mulf %1, %1 : vector<128x128xf32>
    %cst_11 = arith.constant dense<0.000000e+00> : vector<1x128xf32>
    %11 = tpu.matmul %9, %10, %cst_11 {dimension_numbers = #tpu.dot_dimension_numbers<[1], [1], [0], [0], [0, 0, 1, 0], [], []>} : vector<1x128xf32>, vector<128x128xf32>, vector<1x128xf32> -> vector<1x128xf32>
    %cst_12 = arith.constant 2.000000e-01 : f32
    %12 = vector.broadcast %cst_12 : f32 to vector<128x128xf32>
    %13 = arith.mulf %12, %4 : vector<128x128xf32>
    %cst_13 = arith.constant 1.000000e-01 : f32
    %14 = vector.broadcast %cst_13 : f32 to vector<128x128xf32>
    %15 = arith.mulf %14, %5 : vector<128x128xf32>
    %16 = arith.addf %13, %15 : vector<128x128xf32>
    %17 = arith.subf %2, %3 : vector<128x128xf32>
    %18 = arith.mulf %17, %17 : vector<128x128xf32>
    %19 = vector.broadcast %8 : vector<128x1xf32> to vector<128x128xf32>
    %20 = vector.broadcast %11 : vector<1x128xf32> to vector<128x128xf32>
    %21 = arith.addf %19, %20 : vector<128x128xf32>
    %cst_14 = arith.constant 2.000000e+00 : f32
    %22 = vector.broadcast %cst_14 : f32 to vector<128x128xf32>
    %23 = arith.mulf %22, %2 : vector<128x128xf32>
    %24 = arith.subf %21, %23 : vector<128x128xf32>
    %25 = arith.mulf %16, %24 : vector<128x128xf32>
    %26 = arith.addf %18, %25 : vector<128x128xf32>
    %27 = vector.shape_cast %26 : vector<128x128xf32> to vector<1x128x128xf32>
    %cst_15 = arith.constant dense<0.000000e+00> : vector<1xf32>
    %28 = vector.multi_reduction <add>, %27, %cst_15 [1, 2] : vector<1x128x128xf32> to vector<1xf32>
    %29 = vector.shape_cast %28 : vector<1xf32> to vector<1x1x1xf32>
    %30 = vector.extract %29[0, 0, 0] : f32 from vector<1x1x1xf32>
    %31 = arith.mulf %4, %4 : vector<128x128xf32>
    %32 = vector.shape_cast %31 : vector<128x128xf32> to vector<1x128x128xf32>
    %cst_16 = arith.constant dense<0.000000e+00> : vector<1xf32>
    %33 = vector.multi_reduction <add>, %32, %cst_16 [1, 2] : vector<1x128x128xf32> to vector<1xf32>
    %34 = vector.shape_cast %33 : vector<1xf32> to vector<1x1x1xf32>
    %35 = vector.extract %34[0, 0, 0] : f32 from vector<1x1x1xf32>
    %36 = tpu.iota {dimensions = array<i32: 1>} : vector<1x8x128xi32>
    %37 = tpu.iota {dimensions = array<i32: 2>} : vector<1x8x128xi32>
    %c0_i32 = arith.constant 0 : i32
    %38 = vector.broadcast %c0_i32 : i32 to vector<1x8x128xi32>
    %39 = arith.cmpi eq, %36, %38 : vector<1x8x128xi32>
    %c0_i32_17 = arith.constant 0 : i32
    %40 = vector.broadcast %c0_i32_17 : i32 to vector<1x8x128xi32>
    %41 = arith.cmpi eq, %37, %40 : vector<1x8x128xi32>
    %42 = arith.andi %39, %41 : vector<1x8x128xi1>
    %cst_18 = arith.constant 0.000000e+00 : f32
    %43 = vector.broadcast %30 : f32 to vector<1x8x128xf32>
    %44 = vector.broadcast %cst_18 : f32 to vector<1x8x128xf32>
    %45 = arith.select %42, %43, %44 : vector<1x8x128xi1>, vector<1x8x128xf32>
    %c0_i32_19 = arith.constant 0 : i32
    %46 = vector.broadcast %c0_i32_19 : i32 to vector<1x8x128xi32>
    %47 = arith.cmpi eq, %36, %46 : vector<1x8x128xi32>
    %c1_i32 = arith.constant 1 : i32
    %48 = vector.broadcast %c1_i32 : i32 to vector<1x8x128xi32>
    %49 = arith.cmpi eq, %37, %48 : vector<1x8x128xi32>
    %50 = arith.andi %47, %49 : vector<1x8x128xi1>
    %cst_20 = arith.constant 0.000000e+00 : f32
    %51 = vector.broadcast %35 : f32 to vector<1x8x128xf32>
    %52 = vector.broadcast %cst_20 : f32 to vector<1x8x128xf32>
    %53 = arith.select %50, %51, %52 : vector<1x8x128xi1>, vector<1x8x128xf32>
    %54 = arith.addf %45, %53 : vector<1x8x128xf32>
    %c0_i32_21 = arith.constant 0 : i32
    %55 = arith.cmpi eq, %arg1, %c0_i32_21 : i32
    %56 = arith.extui %55 : i1 to i32
    %c0_i32_22 = arith.constant 0 : i32
    %57 = arith.cmpi ne, %56, %c0_i32_22 : i32
    scf.if %57 {
      %cst_29 = arith.constant 0.000000e+00 : f32
      %61 = vector.broadcast %cst_29 : f32 to vector<1x8x128xf32>
      %c0_30 = arith.constant 0 : index
      %c0_31 = arith.constant 0 : index
      %c0_32 = arith.constant 0 : index
      %62 = vector.load %arg7[%c0_30, %c0_31, %c0_32] : memref<1x8x128xf32, #tpu.memory_space<vmem>>, vector<1x8x128xf32>
      tpu.vector_store %arg7[%c0_30, %c0_31, %c0_32], %61 {strides = array<i32>} : memref<1x8x128xf32, #tpu.memory_space<vmem>>, vector<1x8x128xf32>,
    } else {
    }
    %c0_23 = arith.constant 0 : index
    %c0_24 = arith.constant 0 : index
    %c0_25 = arith.constant 0 : index
    %58 = vector.load %arg7[%c0_23, %c0_24, %c0_25] : memref<1x8x128xf32, #tpu.memory_space<vmem>>, vector<1x8x128xf32>
    %59 = arith.addf %58, %54 : vector<1x8x128xf32>
    %c0_26 = arith.constant 0 : index
    %c0_27 = arith.constant 0 : index
    %c0_28 = arith.constant 0 : index
    %60 = vector.load %arg7[%c0_26, %c0_27, %c0_28] : memref<1x8x128xf32, #tpu.memory_space<vmem>>, vector<1x8x128xf32>
    tpu.vector_store %arg7[%c0_26, %c0_27, %c0_28], %59 {strides = array<i32>} : memref<1x8x128xf32, #tpu.memory_space<vmem>>, vector<1x8x128xf32>,
    return
  }
  func.func @transform_0(%arg0: i32, %arg1: i32) -> (i32, i32) {
    %c0_i32 = arith.constant 0 : i32
    %c0_i32_0 = arith.constant 0 : i32
    return %arg0, %c0_i32 : i32, i32
  }
  func.func @transform_1(%arg0: i32, %arg1: i32) -> (i32, i32) {
    %c0_i32 = arith.constant 0 : i32
    %c0_i32_0 = arith.constant 0 : i32
    return %arg1, %c0_i32 : i32, i32
  }
  func.func @transform_2(%arg0: i32, %arg1: i32) -> (i32, i32) {
    %c0_i32 = arith.constant 0 : i32
    return %arg0, %arg1 : i32, i32
  }
  func.func @transform_3(%arg0: i32, %arg1: i32) -> (i32, i32) {
    %c0_i32 = arith.constant 0 : i32
    return %arg0, %arg1 : i32, i32
  }
  func.func @transform_4(%arg0: i32, %arg1: i32) -> (i32, i32) {
    %c0_i32 = arith.constant 0 : i32
    return %arg0, %arg1 : i32, i32
  }
  func.func @transform_5(%arg0: i32, %arg1: i32) -> (i32, i32, i32) {
    %c0_i32 = arith.constant 0 : i32
    %c0_i32_0 = arith.constant 0 : i32
    %c0_i32_1 = arith.constant 0 : i32
    return %arg0, %c0_i32, %c0_i32_0 : i32, i32, i32
  }
}

</mosaic_0001>

<llo_original>
// kernel: tpu_custom_call.1
$region0: #{tpu_custom_call.1}
  #allocation0 [shape = 'u32[]', space=smem, size = 0x4, offset = 0x4, fixed_abs, tag = 'smem constant byte address 0x4 - core index']
  #allocation1 [shape = 'u32[144,128]{1,0:T(1,128)}', space=vmem, size = 0x12000, scoped, tag = 'internal scratch']
  %s0 = inlined_call_operand.hbm [shape: f32[128,128], index: 0, kind: input, shape index: {}]
  %s1 = inlined_call_operand.hbm [shape: f32[128,128], index: 1, kind: input, shape index: {}]
  %s2 = inlined_call_operand.hbm [shape: f32[128,128], index: 2, kind: input, shape index: {}]
  %s3 = inlined_call_operand.hbm [shape: f32[128,128], index: 3, kind: input, shape index: {}]
  %s4 = inlined_call_operand.hbm [shape: f32[128,128], index: 4, kind: input, shape index: {}]
  %s5 = inlined_call_operand.hbm [shape: f32[1,8,128], index: 5, kind: output, shape index: {}]
  %s6 = sld [smem:[#allocation0]]
  $region54: #{tpu_custom_call.1} parent=0
    _
  %s8 = ssub.s32 1, %s6
  %s9 = scalar_select 0, %s8, %s6
  $region1: #{tpu_custom_call.1} parent=0
    #allocation2 [shape = 'u8[65536]{0}', space=vmem, size = 0x10000, scoped, tag = 'input window, operand 0, single buffered']
    #allocation3 [shape = 's32[1]{0}', space=sflag, size = 0x4, scoped, tag = 'scoped memory for tpu_custom_call.1']
    #allocation4 [shape = 's32[1]{0}', space=sflag, size = 0x4, scoped, tag = 'scoped memory for tpu_custom_call.1']
    #allocation5 [shape = 'u8[65536]{0}', space=vmem, size = 0x10000, scoped, tag = 'input window, operand 1, single buffered']
    #allocation6 [shape = 's32[1]{0}', space=sflag, size = 0x4, scoped, tag = 'scoped memory for tpu_custom_call.1']
    #allocation7 [shape = 'u8[65536]{0}', space=vmem, size = 0x10000, scoped, tag = 'input window, operand 2, single buffered']
    #allocation8 [shape = 'u8[65536]{0}', space=vmem, size = 0x10000, scoped, tag = 'input window, operand 3, single buffered']
    #allocation9 [shape = 's32[1]{0}', space=sflag, size = 0x4, scoped, tag = 'scoped memory for tpu_custom_call.1']
    #allocation10 [shape = 'u8[65536]{0}', space=vmem, size = 0x10000, scoped, tag = 'input window, operand 4, single buffered']
    #allocation11 [shape = 'u8[4096]{0}', space=vmem, size = 0x1000, scoped, tag = 'output window, operand 0, single buffered']
    %10 = vsyncpa [#allocation3], 0
    %11 = vsyncpa [#allocation6], 0
    %12 = vsyncpa [#allocation9], 0
    %13 = vsyncpa [#allocation4], 0
    // Predicated region
    $region2: #{tpu_custom_call.1} parent=1 // pred_check
      _
    $region3: #{tpu_custom_call.1} parent=1 // pred_check_branch
      %15 = sbr.rel (0) target = $region5
    $region4: #{tpu_custom_call.1} parent=1 // pred_region
      %s17 = ssub.s32 2048, 2048
      %18 = vsyncadd [#allocation3], %s17
      %s19 = sshll.u32 [#allocation2], 4
      %s20 = int_to_ptr.vmem [resolvable:$true] %s19
      %25 = dma.hbm_to_vmem [thread:$0]  %s0, 2048, %s20, [#allocation3], 128, 128, 8
    $region5: #{tpu_custom_call.1} parent=1 // pred_fallthru
      _
    // Predicated region
    $region6: #{tpu_custom_call.1} parent=1 // pred_check
      _
    $region7: #{tpu_custom_call.1} parent=1 // pred_check_branch
      %27 = sbr.rel (0) target = $region9
    $region8: #{tpu_custom_call.1} parent=1 // pred_region
      %s29 = ssub.s32 2048, 2048
      %30 = vsyncadd [#allocation6], %s29
      %s31 = sshll.u32 [#allocation5], 4
      %s32 = int_to_ptr.vmem [resolvable:$true] %s31
      %37 = dma.hbm_to_vmem [thread:$0]  %s1, 2048, %s32, [#allocation6], 128, 128, 8
    $region9: #{tpu_custom_call.1} parent=1 // pred_fallthru
      _
    // Predicated region
    $region10: #{tpu_custom_call.1} parent=1 // pred_check
      _
    $region11: #{tpu_custom_call.1} parent=1 // pred_check_branch
      %39 = sbr.rel (0) target = $region13
    $region12: #{tpu_custom_call.1} parent=1 // pred_region
      %s41 = ssub.s32 2048, 2048
      %42 = vsyncadd [#allocation6], %s41
      %s43 = sshll.u32 [#allocation7], 4
      %s44 = int_to_ptr.vmem [resolvable:$true] %s43
      %49 = dma.hbm_to_vmem [thread:$0]  %s2, 2048, %s44, [#allocation6], 128, 128, 8
    $region13: #{tpu_custom_call.1} parent=1 // pred_fallthru
      _
    // Predicated region
    $region14: #{tpu_custom_call.1} parent=1 // pred_check
      _
    $region15: #{tpu_custom_call.1} parent=1 // pred_check_branch
      %51 = sbr.rel (0) target = $region17
    $region16: #{tpu_custom_call.1} parent=1 // pred_region
      %s53 = ssub.s32 2048, 2048
      %54 = vsyncadd [#allocation9], %s53
      %s55 = sshll.u32 [#allocation8], 4
      %s56 = int_to_ptr.vmem [resolvable:$true] %s55
      %61 = dma.hbm_to_vmem [thread:$0]  %s3, 2048, %s56, [#allocation9], 128, 128, 8
    $region17: #{tpu_custom_call.1} parent=1 // pred_fallthru
      _
    // Predicated region
    $region18: #{tpu_custom_call.1} parent=1 // pred_check
      _
    $region19: #{tpu_custom_call.1} parent=1 // pred_check_branch
      %63 = sbr.rel (0) target = $region21
    $region20: #{tpu_custom_call.1} parent=1 // pred_region
      %s65 = ssub.s32 2048, 2048
      %66 = vsyncadd [#allocation9], %s65
      %s67 = sshll.u32 [#allocation10], 4
      %s68 = int_to_ptr.vmem [resolvable:$true] %s67
      %73 = dma.hbm_to_vmem [thread:$0]  %s4, 2048, %s68, [#allocation9], 128, 128, 8
    $region21: #{tpu_custom_call.1} parent=1 // pred_fallthru
      _
    // Predicated region
    $region22: #{tpu_custom_call.1} parent=1 // pred_check
      _
    $region23: #{tpu_custom_call.1} parent=1 // pred_check_branch
      %75 = sbr.rel (0) target = $region25
    $region24: #{tpu_custom_call.1} parent=1 // pred_region
      %76 = dma.done [#allocation3], 2048
    $region25: #{tpu_custom_call.1} parent=1 // pred_fallthru
      _
    // Predicated region
    $region26: #{tpu_custom_call.1} parent=1 // pred_check
      _
    $region27: #{tpu_custom_call.1} parent=1 // pred_check_branch
      %78 = sbr.rel (0) target = $region29
    $region28: #{tpu_custom_call.1} parent=1 // pred_region
      %79 = dma.done [#allocation6], 2048
    $region29: #{tpu_custom_call.1} parent=1 // pred_fallthru
      _
    // Predicated region
    $region30: #{tpu_custom_call.1} parent=1 // pred_check
      _
    $region31: #{tpu_custom_call.1} parent=1 // pred_check_branch
      %81 = sbr.rel (0) target = $region33
    $region32: #{tpu_custom_call.1} parent=1 // pred_region
      %82 = dma.done [#allocation6], 2048
    $region33: #{tpu_custom_call.1} parent=1 // pred_fallthru
      _
    // Predicated region
    $region34: #{tpu_custom_call.1} parent=1 // pred_check
      _
    $region35: #{tpu_custom_call.1} parent=1 // pred_check_branch
      %84 = sbr.rel (0) target = $region37
    $region36: #{tpu_custom_call.1} parent=1 // pred_region
      %85 = dma.done [#allocation9], 2048
    $region37: #{tpu_custom_call.1} parent=1 // pred_fallthru
      _
    // Predicated region
    $region38: #{tpu_custom_call.1} parent=1 // pred_check
      _
    $region39: #{tpu_custom_call.1} parent=1 // pred_check_branch
      %87 = sbr.rel (0) target = $region41
    $region40: #{tpu_custom_call.1} parent=1 // pred_region
      %88 = dma.done [#allocation9], 2048
    $region41: #{tpu_custom_call.1} parent=1 // pred_fallthru
      _
    %v89 = vld [vmem:[#allocation2] sm:$0xff]
    %v90 = vld [vmem:[#allocation2 + $0x8] sm:$0xff]
    %v91 = vld [vmem:[#allocation2 + $0x10] sm:$0xff]
    %v92 = vld [vmem:[#allocation2 + $0x18] sm:$0xff]
    %v93 = vld [vmem:[#allocation2 + $0x20] sm:$0xff]
    %v94 = vld [vmem:[#allocation2 + $0x28] sm:$0xff]
    %v95 = vld [vmem:[#allocation2 + $0x30] sm:$0xff]
    %v96 = vld [vmem:[#allocation2 + $0x38] sm:$0xff]
    %v97 = vld [vmem:[#allocation2 + $0x40] sm:$0xff]
    %v98 = vld [vmem:[#allocation2 + $0x48] sm:$0xff]
    %v99 = vld [vmem:[#allocation2 + $0x50] sm:$0xff]
    %v100 = vld [vmem:[#allocation2 + $0x58] sm:$0xff]
    %v101 = vld [vmem:[#allocation2 + $0x60] sm:$0xff]
    %v102 = vld [vmem:[#allocation2 + $0x68] sm:$0xff]
    %v103 = vld [vmem:[#allocation2 + $0x70] sm:$0xff]
    %v104 = vld [vmem:[#allocation2 + $0x78] sm:$0xff]
    %v105 = vld [vmem:[#allocation5] sm:$0xff]
    %v106 = vld [vmem:[#allocation5 + $0x8] sm:$0xff]
    %v107 = vld [vmem:[#allocation5 + $0x10] sm:$0xff]
    %v108 = vld [vmem:[#allocation5 + $0x18] sm:$0xff]
    %v109 = vld [vmem:[#allocation5 + $0x20] sm:$0xff]
    %v110 = vld [vmem:[#allocation5 + $0x28] sm:$0xff]
    %v111 = vld [vmem:[#allocation5 + $0x30] sm:$0xff]
    %v112 = vld [vmem:[#allocation5 + $0x38] sm:$0xff]
    %v113 = vld [vmem:[#allocation5 + $0x40] sm:$0xff]
    %v114 = vld [vmem:[#allocation5 + $0x48] sm:$0xff]
    %v115 = vld [vmem:[#allocation5 + $0x50] sm:$0xff]
    %v116 = vld [vmem:[#allocation5 + $0x58] sm:$0xff]
    %v117 = vld [vmem:[#allocation5 + $0x60] sm:$0xff]
    %v118 = vld [vmem:[#allocation5 + $0x68] sm:$0xff]
    %v119 = vld [vmem:[#allocation5 + $0x70] sm:$0xff]
    %v120 = vld [vmem:[#allocation5 + $0x78] sm:$0xff]
    %121 = vmatprep.subr.mxu0 0.0
    %122 = vmatpush1.xpose.msra.mxu0 %v105
    %123 = vmatprep.subr.mxu0 0.0
    %124 = vmatpush1.xpose.msra.mxu0 %v106
    %125 = vmatprep.subr.mxu0 0.0
    %126 = vmatpush1.xpose.msra.mxu0 %v107
    %127 = vmatprep.subr.mxu0 0.0
    %128 = vmatpush1.xpose.msra.mxu0 %v108
    %129 = vmatprep.subr.mxu0 0.0
    %130 = vmatpush1.xpose.msra.mxu0 %v109
    %131 = vmatprep.subr.mxu0 0.0
    %132 = vmatpush1.xpose.msra.mxu0 %v110
    %133 = vmatprep.subr.mxu0 0.0
    %134 = vmatpush1.xpose.msra.mxu0 %v111
    %135 = vmatprep.subr.mxu0 0.0
    %136 = vmatpush1.xpose.msra.mxu0 %v112
    %137 = vmatprep.subr.mxu0 0.0
    %138 = vmatpush1.xpose.msra.mxu0 %v113
    %139 = vmatprep.subr.mxu0 0.0
    %140 = vmatpush1.xpose.msra.mxu0 %v114
    %141 = vmatprep.subr.mxu0 0.0
    %142 = vmatpush1.xpose.msra.mxu0 %v115
    %143 = vmatprep.subr.mxu0 0.0
    %144 = vmatpush1.xpose.msra.mxu0 %v116
    %145 = vmatprep.subr.mxu0 0.0
    %146 = vmatpush1.xpose.msra.mxu0 %v117
    %147 = vmatprep.subr.mxu0 0.0
    %148 = vmatpush1.xpose.msra.mxu0 %v118
    %149 = vmatprep.subr.mxu0 0.0
    %150 = vmatpush1.xpose.msra.mxu0 %v119
    %151 = vmatprep.subr.mxu0 0.0
    %152 = vmatpush1.xpose.msra.mxu0 %v120
    %153 = vmatprep.subr.mxu0 0.0
    %154 = vmatpush1.xpose.msra.mxu0 0.0
    %155 = vmatprep.subr.mxu0 0.0
    %156 = vmatpush1.xpose.msra.mxu0 0.0
    %157 = vmatprep.subr.mxu0 0.0
    %158 = vmatpush1.xpose.msra.mxu0 0.0
    %159 = vmatprep.subr.mxu0 0.0
    %160 = vmatpush1.xpose.msra.mxu0 0.0
    %161 = vmatprep.subr.mxu0 0.0
    %162 = vmatpush1.xpose.msra.mxu0 0.0
    %163 = vmatprep.subr.mxu0 0.0
    %164 = vmatpush1.xpose.msra.mxu0 0.0
    %165 = vmatprep.subr.mxu0 0.0
    %166 = vmatpush1.xpose.msra.mxu0 0.0
    %167 = vmatprep.subr.mxu0 0.0
    %168 = vmatpush1.xpose.msra.mxu0 0.0
    %169 = vmatprep.subr.mxu0 0.0
    %170 = vmatpush1.xpose.msra.mxu0 0.0
    %171 = vmatprep.subr.mxu0 0.0
    %172 = vmatpush1.xpose.msra.mxu0 0.0
    %173 = vmatprep.subr.mxu0 0.0
    %174 = vmatpush1.xpose.msra.mxu0 0.0
    %175 = vmatprep.subr.mxu0 0.0
    %176 = vmatpush1.xpose.msra.mxu0 0.0
    %177 = vmatprep.subr.mxu0 0.0
    %178 = vmatpush1.xpose.msra.mxu0 0.0
    %179 = vmatprep.subr.mxu0 0.0
    %180 = vmatpush1.xpose.msra.mxu0 0.0
    %181 = vmatprep.subr.mxu0 0.0
    %182 = vmatpush1.xpose.msra.mxu0 0.0
    %183 = vmatprep.subr.mxu0 0.0
    %184 = vmatpush1.xpose.msra.mxu0 0.0
    %185 = vmatprep.mubr.f32.mxu0 0.0
    %186 = vmatmul.mubr.f32.gmra.mrb[0].mxu0 %v89
    %v187 = vpop.f32.mrb[0].mxu0
    %v188 = vadd.f32 0.0, %v187
    %v189 = vpop.f32.mrb[0].mxu0
    %190 = vmatprep.mubr.f32.mxu0 0.0
    %191 = vmatmul.mubr.f32.gmra.mrb[0].mxu0 %v90
    %v192 = vpop.f32.mrb[0].mxu0
    %v193 = vadd.f32 0.0, %v192
    %v194 = vpop.f32.mrb[0].mxu0
    %195 = vmatprep.mubr.f32.mxu0 0.0
    %196 = vmatmul.mubr.f32.gmra.mrb[0].mxu0 %v91
    %v197 = vpop.f32.mrb[0].mxu0
    %v198 = vadd.f32 0.0, %v197
    %v199 = vpop.f32.mrb[0].mxu0
    %200 = vmatprep.mubr.f32.mxu0 0.0
    %201 = vmatmul.mubr.f32.gmra.mrb[0].mxu0 %v92
    %v202 = vpop.f32.mrb[0].mxu0
    %v203 = vadd.f32 0.0, %v202
    %v204 = vpop.f32.mrb[0].mxu0
    %205 = vmatprep.mubr.f32.mxu0 0.0
    %206 = vmatmul.mubr.f32.gmra.mrb[0].mxu0 %v93
    %v207 = vpop.f32.mrb[0].mxu0
    %v208 = vadd.f32 0.0, %v207
    %v209 = vpop.f32.mrb[0].mxu0
    %210 = vmatprep.mubr.f32.mxu0 0.0
    %211 = vmatmul.mubr.f32.gmra.mrb[0].mxu0 %v94
    %v212 = vpop.f32.mrb[0].mxu0
    %v213 = vadd.f32 0.0, %v212
    %v214 = vpop.f32.mrb[0].mxu0
    %215 = vmatprep.mubr.f32.mxu0 0.0
    %216 = vmatmul.mubr.f32.gmra.mrb[0].mxu0 %v95
    %v217 = vpop.f32.mrb[0].mxu0
    %v218 = vadd.f32 0.0, %v217
    %v219 = vpop.f32.mrb[0].mxu0
    %220 = vmatprep.mubr.f32.mxu0 0.0
    %221 = vmatmul.mubr.f32.gmra.mrb[0].mxu0 %v96
    %v222 = vpop.f32.mrb[0].mxu0
    %v223 = vadd.f32 0.0, %v222
    %v224 = vpop.f32.mrb[0].mxu0
    %225 = vmatprep.mubr.f32.mxu0 0.0
    %226 = vmatmul.mubr.f32.gmra.mrb[0].mxu0 %v97
    %v227 = vpop.f32.mrb[0].mxu0
    %v228 = vadd.f32 0.0, %v227
    %v229 = vpop.f32.mrb[0].mxu0
    %230 = vmatprep.mubr.f32.mxu0 0.0
    %231 = vmatmul.mubr.f32.gmra.mrb[0].mxu0 %v98
    %v232 = vpop.f32.mrb[0].mxu0
    %v233 = vadd.f32 0.0, %v232
    %v234 = vpop.f32.mrb[0].mxu0
    %235 = vmatprep.mubr.f32.mxu0 0.0
    %236 = vmatmul.mubr.f32.gmra.mrb[0].mxu0 %v99
    %v237 = vpop.f32.mrb[0].mxu0
    %v238 = vadd.f32 0.0, %v237
    %v239 = vpop.f32.mrb[0].mxu0
    %240 = vmatprep.mubr.f32.mxu0 0.0
    %241 = vmatmul.mubr.f32.gmra.mrb[0].mxu0 %v100
    %v242 = vpop.f32.mrb[0].mxu0
    %v243 = vadd.f32 0.0, %v242
    %v244 = vpop.f32.mrb[0].mxu0
    %245 = vmatprep.mubr.f32.mxu0 0.0
    %246 = vmatmul.mubr.f32.gmra.mrb[0].mxu0 %v101
    %v247 = vpop.f32.mrb[0].mxu0
    %v248 = vadd.f32 0.0, %v247
    %v249 = vpop.f32.mrb[0].mxu0
    %250 = vmatprep.mubr.f32.mxu0 0.0
    %251 = vmatmul.mubr.f32.gmra.mrb[0].mxu0 %v102
    %v252 = vpop.f32.mrb[0].mxu0
    %v253 = vadd.f32 0.0, %v252
    %v254 = vpop.f32.mrb[0].mxu0
    %255 = vmatprep.mubr.f32.mxu0 0.0
    %256 = vmatmul.mubr.f32.gmra.mrb[0].mxu0 %v103
    %v257 = vpop.f32.mrb[0].mxu0
    %v258 = vadd.f32 0.0, %v257
    %v259 = vpop.f32.mrb[0].mxu0
    %260 = vmatprep.mubr.f32.mxu0 0.0
    %261 = vmatmul.mubr.f32.gmra.mrb[0].mxu0 %v104
    %v262 = vpop.f32.mrb[0].mxu0
    %v263 = vadd.f32 0.0, %v262
    %v264 = vpop.f32.mrb[0].mxu0
    %265 = vdwg.mxu0
    %v266 = vld [vmem:[#allocation7] sm:$0xff]
    %v267 = vld [vmem:[#allocation7 + $0x8] sm:$0xff]
    %v268 = vld [vmem:[#allocation7 + $0x10] sm:$0xff]
    %v269 = vld [vmem:[#allocation7 + $0x18] sm:$0xff]
    %v270 = vld [vmem:[#allocation7 + $0x20] sm:$0xff]
    %v271 = vld [vmem:[#allocation7 + $0x28] sm:$0xff]
    %v272 = vld [vmem:[#allocation7 + $0x30] sm:$0xff]
    %v273 = vld [vmem:[#allocation7 + $0x38] sm:$0xff]
    %v274 = vld [vmem:[#allocation7 + $0x40] sm:$0xff]
    %v275 = vld [vmem:[#allocation7 + $0x48] sm:$0xff]
    %v276 = vld [vmem:[#allocation7 + $0x50] sm:$0xff]
    %v277 = vld [vmem:[#allocation7 + $0x58] sm:$0xff]
    %v278 = vld [vmem:[#allocation7 + $0x60] sm:$0xff]
    %v279 = vld [vmem:[#allocation7 + $0x68] sm:$0xff]
    %v280 = vld [vmem:[#allocation7 + $0x70] sm:$0xff]
    %v281 = vld [vmem:[#allocation7 + $0x78] sm:$0xff]
    %v282 = vld [vmem:[#allocation8] sm:$0xff]
    %v283 = vld [vmem:[#allocation8 + $0x8] sm:$0xff]
    %v284 = vld [vmem:[#allocation8 + $0x10] sm:$0xff]
    %v285 = vld [vmem:[#allocation8 + $0x18] sm:$0xff]
    %v286 = vld [vmem:[#allocation8 + $0x20] sm:$0xff]
    %v287 = vld [vmem:[#allocation8 + $0x28] sm:$0xff]
    %v288 = vld [vmem:[#allocation8 + $0x30] sm:$0xff]
    %v289 = vld [vmem:[#allocation8 + $0x38] sm:$0xff]
    %v290 = vld [vmem:[#allocation8 + $0x40] sm:$0xff]
    %v291 = vld [vmem:[#allocation8 + $0x48] sm:$0xff]
    %v292 = vld [vmem:[#allocation8 + $0x50] sm:$0xff]
    %v293 = vld [vmem:[#allocation8 + $0x58] sm:$0xff]
    %v294 = vld [vmem:[#allocation8 + $0x60] sm:$0xff]
    %v295 = vld [vmem:[#allocation8 + $0x68] sm:$0xff]
    %v296 = vld [vmem:[#allocation8 + $0x70] sm:$0xff]
    %v297 = vld [vmem:[#allocation8 + $0x78] sm:$0xff]
    %v298 = vld [vmem:[#allocation10] sm:$0xff]
    %v299 = vld [vmem:[#allocation10 + $0x8] sm:$0xff]
    %v300 = vld [vmem:[#allocation10 + $0x10] sm:$0xff]
    %v301 = vld [vmem:[#allocation10 + $0x18] sm:$0xff]
    %v302 = vld [vmem:[#allocation10 + $0x20] sm:$0xff]
    %v303 = vld [vmem:[#allocation10 + $0x28] sm:$0xff]
    %v304 = vld [vmem:[#allocation10 + $0x30] sm:$0xff]
    %v305 = vld [vmem:[#allocation10 + $0x38] sm:$0xff]
    %v306 = vld [vmem:[#allocation10 + $0x40] sm:$0xff]
    %v307 = vld [vmem:[#allocation10 + $0x48] sm:$0xff]
    %v308 = vld [vmem:[#allocation10 + $0x50] sm:$0xff]
    %v309 = vld [vmem:[#allocation10 + $0x58] sm:$0xff]
    %v310 = vld [vmem:[#allocation10 + $0x60] sm:$0xff]
    %v311 = vld [vmem:[#allocation10 + $0x68] sm:$0xff]
    %v312 = vld [vmem:[#allocation10 + $0x70] sm:$0xff]
    %v313 = vld [vmem:[#allocation10 + $0x78] sm:$0xff]
    %v314 = vmul.f32 %v89, %v89
    %v315 = vmul.f32 %v90, %v90
    %v316 = vmul.f32 %v91, %v91
    %v317 = vmul.f32 %v92, %v92
    %v318 = vmul.f32 %v93, %v93
    %v319 = vmul.f32 %v94, %v94
    %v320 = vmul.f32 %v95, %v95
    %v321 = vmul.f32 %v96, %v96
    %v322 = vmul.f32 %v97, %v97
    %v323 = vmul.f32 %v98, %v98
    %v324 = vmul.f32 %v99, %v99
    %v325 = vmul.f32 %v100, %v100
    %v326 = vmul.f32 %v101, %v101
    %v327 = vmul.f32 %v102, %v102
    %v328 = vmul.f32 %v103, %v103
    %v329 = vmul.f32 %v104, %v104
    %330 = vadd.xlane.f32.xlu0 %v314
    %v331 = vpop.xlane.xlu0 %330
    %332 = vadd.xlane.f32.xlu0 %v315
    %v333 = vpop.xlane.xlu0 %332
    %334 = vadd.xlane.f32.xlu0 %v316
    %v335 = vpop.xlane.xlu0 %334
    %336 = vadd.xlane.f32.xlu0 %v317
    %v337 = vpop.xlane.xlu0 %336
    %338 = vadd.xlane.f32.xlu0 %v318
    %v339 = vpop.xlane.xlu0 %338
    %340 = vadd.xlane.f32.xlu0 %v319
    %v341 = vpop.xlane.xlu0 %340
    %342 = vadd.xlane.f32.xlu0 %v320
    %v343 = vpop.xlane.xlu0 %342
    %344 = vadd.xlane.f32.xlu0 %v321
    %v345 = vpop.xlane.xlu0 %344
    %346 = vadd.xlane.f32.xlu0 %v322
    %v347 = vpop.xlane.xlu0 %346
    %348 = vadd.xlane.f32.xlu0 %v323
    %v349 = vpop.xlane.xlu0 %348
    %350 = vadd.xlane.f32.xlu0 %v324
    %v351 = vpop.xlane.xlu0 %350
    %352 = vadd.xlane.f32.xlu0 %v325
    %v353 = vpop.xlane.xlu0 %352
    %354 = vadd.xlane.f32.xlu0 %v326
    %v355 = vpop.xlane.xlu0 %354
    %356 = vadd.xlane.f32.xlu0 %v327
    %v357 = vpop.xlane.xlu0 %356
    %358 = vadd.xlane.f32.xlu0 %v328
    %v359 = vpop.xlane.xlu0 %358
    %360 = vadd.xlane.f32.xlu0 %v329
    %v361 = vpop.xlane.xlu0 %360
    %v362 = vmul.f32 %v105, %v105
    %v363 = vmul.f32 %v106, %v106
    %v364 = vmul.f32 %v107, %v107
    %v365 = vmul.f32 %v108, %v108
    %v366 = vmul.f32 %v109, %v109
    %v367 = vmul.f32 %v110, %v110
    %v368 = vmul.f32 %v111, %v111
    %v369 = vmul.f32 %v112, %v112
    %v370 = vmul.f32 %v113, %v113
    %v371 = vmul.f32 %v114, %v114
    %v372 = vmul.f32 %v115, %v115
    %v373 = vmul.f32 %v116, %v116
    %v374 = vmul.f32 %v117, %v117
    %v375 = vmul.f32 %v118, %v118
    %v376 = vmul.f32 %v119, %v119
    %v377 = vmul.f32 %v120, %v120
    %378 = vmatprep.subr.mxu0 0.0
    %379 = vmatpush1.xpose.msra.mxu0 %v362
    %380 = vmatprep.subr.mxu0 0.0
    %381 = vmatpush1.xpose.msra.mxu0 %v363
    %382 = vmatprep.subr.mxu0 0.0
    %383 = vmatpush1.xpose.msra.mxu0 %v364
    %384 = vmatprep.subr.mxu0 0.0
    %385 = vmatpush1.xpose.msra.mxu0 %v365
    %386 = vmatprep.subr.mxu0 0.0
    %387 = vmatpush1.xpose.msra.mxu0 %v366
    %388 = vmatprep.subr.mxu0 0.0
    %389 = vmatpush1.xpose.msra.mxu0 %v367
    %390 = vmatprep.subr.mxu0 0.0
    %391 = vmatpush1.xpose.msra.mxu0 %v368
    %392 = vmatprep.subr.mxu0 0.0
    %393 = vmatpush1.xpose.msra.mxu0 %v369
    %394 = vmatprep.subr.mxu0 0.0
    %395 = vmatpush1.xpose.msra.mxu0 %v370
    %396 = vmatprep.subr.mxu0 0.0
    %397 = vmatpush1.xpose.msra.mxu0 %v371
    %398 = vmatprep.subr.mxu0 0.0
    %399 = vmatpush1.xpose.msra.mxu0 %v372
    %400 = vmatprep.subr.mxu0 0.0
    %401 = vmatpush1.xpose.msra.mxu0 %v373
    %402 = vmatprep.subr.mxu0 0.0
    %403 = vmatpush1.xpose.msra.mxu0 %v374
    %404 = vmatprep.subr.mxu0 0.0
    %405 = vmatpush1.xpose.msra.mxu0 %v375
    %406 = vmatprep.subr.mxu0 0.0
    %407 = vmatpush1.xpose.msra.mxu0 %v376
    %408 = vmatprep.subr.mxu0 0.0
    %409 = vmatpush1.xpose.msra.mxu0 %v377
    %410 = vmatprep.subr.mxu0 0.0
    %411 = vmatpush1.xpose.msra.mxu0 0.0
    %412 = vmatprep.subr.mxu0 0.0
    %413 = vmatpush1.xpose.msra.mxu0 0.0
    %414 = vmatprep.subr.mxu0 0.0
    %415 = vmatpush1.xpose.msra.mxu0 0.0
    %416 = vmatprep.subr.mxu0 0.0
    %417 = vmatpush1.xpose.msra.mxu0 0.0
    %418 = vmatprep.subr.mxu0 0.0
    %419 = vmatpush1.xpose.msra.mxu0 0.0
    %420 = vmatprep.subr.mxu0 0.0
    %421 = vmatpush1.xpose.msra.mxu0 0.0
    %422 = vmatprep.subr.mxu0 0.0
    %423 = vmatpush1.xpose.msra.mxu0 0.0
    %424 = vmatprep.subr.mxu0 0.0
    %425 = vmatpush1.xpose.msra.mxu0 0.0
    %426 = vmatprep.subr.mxu0 0.0
    %427 = vmatpush1.xpose.msra.mxu0 0.0
    %428 = vmatprep.subr.mxu0 0.0
    %429 = vmatpush1.xpose.msra.mxu0 0.0
    %430 = vmatprep.subr.mxu0 0.0
    %431 = vmatpush1.xpose.msra.mxu0 0.0
    %432 = vmatprep.subr.mxu0 0.0
    %433 = vmatpush1.xpose.msra.mxu0 0.0
    %434 = vmatprep.subr.mxu0 0.0
    %435 = vmatpush1.xpose.msra.mxu0 0.0
    %436 = vmatprep.subr.mxu0 0.0
    %437 = vmatpush1.xpose.msra.mxu0 0.0
    %438 = vmatprep.subr.mxu0 0.0
    %439 = vmatpush1.xpose.msra.mxu0 0.0
    %440 = vmatprep.subr.mxu0 0.0
    %441 = vmatpush1.xpose.msra.mxu0 0.0
    %442 = vmatprep.mubr.f32.mxu0 0.0
    %443 = vmatmul.mubr.f32.gmra.mrb[0].mxu0 1.0
    %v444 = vpop.f32.mrb[0].mxu0
    %v445 = vadd.f32 0.0, %v444
    %v446 = vpop.f32.mrb[0].mxu0
    %447 = vdwg.mxu0
    %v448 = vmul.f32 %v282, 0.2
    %v449 = vmul.f32 %v283, 0.2
    %v450 = vmul.f32 %v284, 0.2
    %v451 = vmul.f32 %v285, 0.2
    %v452 = vmul.f32 %v286, 0.2
    %v453 = vmul.f32 %v287, 0.2
    %v454 = vmul.f32 %v288, 0.2
    %v455 = vmul.f32 %v289, 0.2
    %v456 = vmul.f32 %v290, 0.2
    %v457 = vmul.f32 %v291, 0.2
    %v458 = vmul.f32 %v292, 0.2
    %v459 = vmul.f32 %v293, 0.2
    %v460 = vmul.f32 %v294, 0.2
    %v461 = vmul.f32 %v295, 0.2
    %v462 = vmul.f32 %v296, 0.2
    %v463 = vmul.f32 %v297, 0.2
    %v464 = vmul.f32 %v298, 0.1
    %v465 = vmul.f32 %v299, 0.1
    %v466 = vmul.f32 %v300, 0.1
    %v467 = vmul.f32 %v301, 0.1
    %v468 = vmul.f32 %v302, 0.1
    %v469 = vmul.f32 %v303, 0.1
    %v470 = vmul.f32 %v304, 0.1
    %v471 = vmul.f32 %v305, 0.1
    %v472 = vmul.f32 %v306, 0.1
    %v473 = vmul.f32 %v307, 0.1
    %v474 = vmul.f32 %v308, 0.1
    %v475 = vmul.f32 %v309, 0.1
    %v476 = vmul.f32 %v310, 0.1
    %v477 = vmul.f32 %v311, 0.1
    %v478 = vmul.f32 %v312, 0.1
    %v479 = vmul.f32 %v313, 0.1
    %v480 = vadd.f32 %v448, %v464
    %v481 = vadd.f32 %v449, %v465
    %v482 = vadd.f32 %v450, %v466
    %v483 = vadd.f32 %v451, %v467
    %v484 = vadd.f32 %v452, %v468
    %v485 = vadd.f32 %v453, %v469
    %v486 = vadd.f32 %v454, %v470
    %v487 = vadd.f32 %v455, %v471
    %v488 = vadd.f32 %v456, %v472
    %v489 = vadd.f32 %v457, %v473
    %v490 = vadd.f32 %v458, %v474
    %v491 = vadd.f32 %v459, %v475
    %v492 = vadd.f32 %v460, %v476
    %v493 = vadd.f32 %v461, %v477
    %v494 = vadd.f32 %v462, %v478
    %v495 = vadd.f32 %v463, %v479
    %v496 = vsub.f32 %v188, %v266
    %v497 = vsub.f32 %v193, %v267
    %v498 = vsub.f32 %v198, %v268
    %v499 = vsub.f32 %v203, %v269
    %v500 = vsub.f32 %v208, %v270
    %v501 = vsub.f32 %v213, %v271
    %v502 = vsub.f32 %v218, %v272
    %v503 = vsub.f32 %v223, %v273
    %v504 = vsub.f32 %v228, %v274
    %v505 = vsub.f32 %v233, %v275
    %v506 = vsub.f32 %v238, %v276
    %v507 = vsub.f32 %v243, %v277
    %v508 = vsub.f32 %v248, %v278
    %v509 = vsub.f32 %v253, %v279
    %v510 = vsub.f32 %v258, %v280
    %v511 = vsub.f32 %v263, %v281
    %v512 = vmul.f32 %v496, %v496
    %v513 = vmul.f32 %v497, %v497
    %v514 = vmul.f32 %v498, %v498
    %v515 = vmul.f32 %v499, %v499
    %v516 = vmul.f32 %v500, %v500
    %v517 = vmul.f32 %v501, %v501
    %v518 = vmul.f32 %v502, %v502
    %v519 = vmul.f32 %v503, %v503
    %v520 = vmul.f32 %v504, %v504
    %v521 = vmul.f32 %v505, %v505
    %v522 = vmul.f32 %v506, %v506
    %v523 = vmul.f32 %v507, %v507
    %v524 = vmul.f32 %v508, %v508
    %v525 = vmul.f32 %v509, %v509
    %v526 = vmul.f32 %v510, %v510
    %v527 = vmul.f32 %v511, %v511
    %v528 = vlaneseq
    %v529 = vshrl.u32 %v528, 7
    %v530 = vsub.s32 0, %v529
    %v531 = vrot.slane %v445, %v530
    %v532 = vadd.f32 %v331, %v531
    %v533 = vadd.f32 %v333, %v531
    %v534 = vadd.f32 %v335, %v531
    %v535 = vadd.f32 %v337, %v531
    %v536 = vadd.f32 %v339, %v531
    %v537 = vadd.f32 %v341, %v531
    %v538 = vadd.f32 %v343, %v531
    %v539 = vadd.f32 %v345, %v531
    %v540 = vadd.f32 %v347, %v531
    %v541 = vadd.f32 %v349, %v531
    %v542 = vadd.f32 %v351, %v531
    %v543 = vadd.f32 %v353, %v531
    %v544 = vadd.f32 %v355, %v531
    %v545 = vadd.f32 %v357, %v531
    %v546 = vadd.f32 %v359, %v531
    %v547 = vadd.f32 %v361, %v531
    %v548 = vmul.f32 %v188, 2.0
    %v549 = vmul.f32 %v193, 2.0
    %v550 = vmul.f32 %v198, 2.0
    %v551 = vmul.f32 %v203, 2.0
    %v552 = vmul.f32 %v208, 2.0
    %v553 = vmul.f32 %v213, 2.0
    %v554 = vmul.f32 %v218, 2.0
    %v555 = vmul.f32 %v223, 2.0
    %v556 = vmul.f32 %v228, 2.0
    %v557 = vmul.f32 %v233, 2.0
    %v558 = vmul.f32 %v238, 2.0
    %v559 = vmul.f32 %v243, 2.0
    %v560 = vmul.f32 %v248, 2.0
    %v561 = vmul.f32 %v253, 2.0
    %v562 = vmul.f32 %v258, 2.0
    %v563 = vmul.f32 %v263, 2.0
    %v564 = vsub.f32 %v532, %v548
    %v565 = vsub.f32 %v533, %v549
    %v566 = vsub.f32 %v534, %v550
    %v567 = vsub.f32 %v535, %v551
    %v568 = vsub.f32 %v536, %v552
    %v569 = vsub.f32 %v537, %v553
    %v570 = vsub.f32 %v538, %v554
    %v571 = vsub.f32 %v539, %v555
    %v572 = vsub.f32 %v540, %v556
    %v573 = vsub.f32 %v541, %v557
    %v574 = vsub.f32 %v542, %v558
    %v575 = vsub.f32 %v543, %v559
    %v576 = vsub.f32 %v544, %v560
    %v577 = vsub.f32 %v545, %v561
    %v578 = vsub.f32 %v546, %v562
    %v579 = vsub.f32 %v547, %v563
    %v580 = vmul.f32 %v480, %v564
    %v581 = vmul.f32 %v481, %v565
    %v582 = vmul.f32 %v482, %v566
    %v583 = vmul.f32 %v483, %v567
    %v584 = vmul.f32 %v484, %v568
    %v585 = vmul.f32 %v485, %v569
    %v586 = vmul.f32 %v486, %v570
    %v587 = vmul.f32 %v487, %v571
    %v588 = vmul.f32 %v488, %v572
    %v589 = vmul.f32 %v489, %v573
    %v590 = vmul.f32 %v490, %v574
    %v591 = vmul.f32 %v491, %v575
    %v592 = vmul.f32 %v492, %v576
    %v593 = vmul.f32 %v493, %v577
    %v594 = vmul.f32 %v494, %v578
    %v595 = vmul.f32 %v495, %v579
    %v596 = vadd.f32 %v512, %v580
    %v597 = vadd.f32 %v513, %v581
    %v598 = vadd.f32 %v514, %v582
    %v599 = vadd.f32 %v515, %v583
    %v600 = vadd.f32 %v516, %v584
    %v601 = vadd.f32 %v517, %v585
    %v602 = vadd.f32 %v518, %v586
    %v603 = vadd.f32 %v519, %v587
    %v604 = vadd.f32 %v520, %v588
    %v605 = vadd.f32 %v521, %v589
    %v606 = vadd.f32 %v522, %v590
    %v607 = vadd.f32 %v523, %v591
    %v608 = vadd.f32 %v524, %v592
    %v609 = vadd.f32 %v525, %v593
    %v610 = vadd.f32 %v526, %v594
    %v611 = vadd.f32 %v527, %v595
    %v612 = vadd.f32 %v596, %v597
    %v613 = vadd.f32 %v612, %v598
    %v614 = vadd.f32 %v613, %v599
    %v615 = vadd.f32 %v614, %v600
    %v616 = vadd.f32 %v615, %v601
    %v617 = vadd.f32 %v616, %v602
    %v618 = vadd.f32 %v617, %v603
    %v619 = vadd.f32 %v618, %v604
    %v620 = vadd.f32 %v619, %v605
    %v621 = vadd.f32 %v620, %v606
    %v622 = vadd.f32 %v621, %v607
    %v623 = vadd.f32 %v622, %v608
    %v624 = vadd.f32 %v623, %v609
    %v625 = vadd.f32 %v624, %v610
    %v626 = vadd.f32 %v625, %v611
    %627 = vadd.xlane.f32.xlu0 %v626
    %v628 = vpop.xlane.xlu0 %627
    %v629 = vrot.slane %v628, 4
    %v630 = vadd.f32 %v628, %v629
    %v631 = vrot.slane %v630, 2
    %v632 = vadd.f32 %v630, %v631
    %v633 = vrot.slane %v632, 1
    %v634 = vadd.f32 %v632, %v633
    %s635 = vtos %v634
    %v636 = vmul.f32 %v282, %v282
    %v637 = vmul.f32 %v283, %v283
    %v638 = vmul.f32 %v284, %v284
    %v639 = vmul.f32 %v285, %v285
    %v640 = vmul.f32 %v286, %v286
    %v641 = vmul.f32 %v287, %v287
    %v642 = vmul.f32 %v288, %v288
    %v643 = vmul.f32 %v289, %v289
    %v644 = vmul.f32 %v290, %v290
    %v645 = vmul.f32 %v291, %v291
    %v646 = vmul.f32 %v292, %v292
    %v647 = vmul.f32 %v293, %v293
    %v648 = vmul.f32 %v294, %v294
    %v649 = vmul.f32 %v295, %v295
    %v650 = vmul.f32 %v296, %v296
    %v651 = vmul.f32 %v297, %v297
    %v652 = vadd.f32 %v636, %v637
    %v653 = vadd.f32 %v652, %v638
    %v654 = vadd.f32 %v653, %v639
    %v655 = vadd.f32 %v654, %v640
    %v656 = vadd.f32 %v655, %v641
    %v657 = vadd.f32 %v656, %v642
    %v658 = vadd.f32 %v657, %v643
    %v659 = vadd.f32 %v658, %v644
    %v660 = vadd.f32 %v659, %v645
    %v661 = vadd.f32 %v660, %v646
    %v662 = vadd.f32 %v661, %v647
    %v663 = vadd.f32 %v662, %v648
    %v664 = vadd.f32 %v663, %v649
    %v665 = vadd.f32 %v664, %v650
    %v666 = vadd.f32 %v665, %v651
    %667 = vadd.xlane.f32.xlu0 %v666
    %v668 = vpop.xlane.xlu0 %667
    %v669 = vrot.slane %v668, 4
    %v670 = vadd.f32 %v668, %v669
    %v671 = vrot.slane %v670, 2
    %v672 = vadd.f32 %v670, %v671
    %v673 = vrot.slane %v672, 1
    %v674 = vadd.f32 %v672, %v673
    %s675 = vtos %v674
    %v676 = vlaneseq
    %v677 = vshrl.u32 %v676, 7
    %v678 = vlaneseq
    %v679 = vand.u32 %v678, 127
    %vm680 = vcmp.eq.s32.totalorder %v677, 0
    %vm681 = vcmp.eq.s32.totalorder %v679, 0
    %vm682 = vmand %vm680, %vm681
    %v683 = vstv %s635
    %v684 = vsel %vm682, %v683, 0.0
    %vm685 = vcmp.eq.s32.totalorder %v679, 1
    %vm686 = vmand %vm680, %vm685
    %v687 = vstv %s675
    %v688 = vsel %vm686, %v687, 0.0
    %v689 = vadd.f32 %v684, %v688
    %p690 = scmp.eq.s32.totalorder 0, 0
    // Predicated region
    $region42: #{tpu_custom_call.1} parent=1 // pred_check
      %p691 = pneg %p690
    $region43: #{tpu_custom_call.1} parent=1 // pred_check_branch
      %693 = sbr.rel (%p691) target = $region45
    $region44: #{tpu_custom_call.1} parent=1 // pred_region
      %694 = vst [vmem:[#allocation11] sm:$0xff] 0.0
    $region45: #{tpu_custom_call.1} parent=1 // pred_fallthru
      _
    %v695 = vld [vmem:[#allocation11] sm:$0xff]
    %v696 = vadd.f32 %v695, %v689
    %697 = vst [vmem:[#allocation11] sm:$0xff] %v696
    // Predicated region
    $region46: #{tpu_custom_call.1} parent=1 // pred_check
      _
    $region47: #{tpu_custom_call.1} parent=1 // pred_check_branch
      %699 = sbr.rel (0) target = $region49
    $region48: #{tpu_custom_call.1} parent=1 // pred_region
      %s701 = ssub.s32 128, 128
      %702 = vsyncadd [#allocation4], %s701
      %s704 = sshll.u32 [#allocation11], 4
      %s705 = int_to_ptr.vmem [resolvable:$true] %s704
      %707 = dma.vmem_to_hbm [thread:$0]  %s705, 128, %s5, [#allocation4]
    $region49: #{tpu_custom_call.1} parent=1 // pred_fallthru
      _
    // Predicated region
    $region50: #{tpu_custom_call.1} parent=1 // pred_check
      _
    $region51: #{tpu_custom_call.1} parent=1 // pred_check_branch
      %709 = sbr.rel (0) target = $region53
    $region52: #{tpu_custom_call.1} parent=1 // pred_region
      %710 = dma.done [#allocation4], 128
    $region53: #{tpu_custom_call.1} parent=1 // pred_fallthru
      _
    %711 = vsyncpa [#allocation3], 1
    %712 = vsyncpa [#allocation6], 1
    %713 = vsyncpa [#allocation9], 1
    %714 = vsyncpa [#allocation4], 1

</llo_original>
